<compile_context>
chip_gen: v7x
topology: tpu7x:2x2x1
jax: 0.10.0
libtpu: 0.0.40
codegen_flags: <defaults>
</compile_context>

<pallas_src>
import functools

import jax
import jax.numpy as jnp
from jax import lax
from jax.experimental import pallas as pl
from jax.experimental.pallas import tpu as pltpu


def _word_dropout_kernel(seed_ref, x_ref, o_ref, *, p: float, dropped_index: int,
                         block_b: int, block_s: int, seq_len: int):
    x = x_ref[...]
    shape = x.shape

    # Global (row, col) indices of this tile's elements.
    row0 = pl.program_id(0) * block_b
    col0 = pl.program_id(1) * block_s
    rows = lax.broadcasted_iota(jnp.int32, shape, 0) + row0
    cols = lax.broadcasted_iota(jnp.int32, shape, 1) + col0

    # Stateless counter-based PRNG: lowbias32 hash of (seed, linear index).
    # All integer VPU ops; identical bits regardless of tiling.
    lin = rows.astype(jnp.uint32) * jnp.uint32(seq_len) + cols.astype(jnp.uint32)
    seed_u = seed_ref[0].astype(jnp.uint32)
    h = lin ^ (seed_u * jnp.uint32(0x9E3779B9))
    h = (h ^ (h >> 16)) * jnp.uint32(0x7FEB352D)
    h = (h ^ (h >> 15)) * jnp.uint32(0x846CA68B)
    h = h ^ (h >> 16)

    # Integer threshold compare: drop iff U[0,1) < p  <=>  bits < p * 2^32.
    thresh = jnp.uint32(min(int(p * float(1 << 32)), (1 << 32) - 1))
    drop = h < thresh

    # Never drop global sequence position 0 (mask[:, 0] = False).
    drop = jnp.logical_and(drop, cols != 0)

    o_ref[...] = jnp.where(drop, jnp.full_like(x, dropped_index), x)


def word_dropout(x, seed: int, p: float, dropped_index: int, training: bool = True):
    """Pallas implementation of WordDropout.forward.

    x: integer array of shape (B, S) with token ids.
    """
    if (not training) or p <= 0.0:
        return x

    B, S = x.shape

    # --- Tile selection -----------------------------------------------------
    # Sublane (B) block: up to 512 rows, or the full extent if B is small.
    block_b = B if B <= 512 else 512
    # Lane (S) block: multiple of 128, sized so one input tile is ~2 MiB
    # (fits comfortably in the default scoped VMEM on v5e/v6e/v7x with
    # double-buffered input + output), but at least 1024 lanes to amortize
    # per-grid-step overhead.
    target_elems = (2 * 1024 * 1024) // 4          # ~2 MiB of int32
    bs_cap = max(1024, (target_elems // block_b) // 128 * 128)
    block_s = S if S <= bs_cap else bs_cap

    grid = (pl.cdiv(B, block_b), pl.cdiv(S, block_s))

    kernel = functools.partial(
        _word_dropout_kernel, p=p, dropped_index=dropped_index,
        block_b=block_b, block_s=block_s, seq_len=S)

    seed_arr = jnp.asarray([seed], dtype=jnp.int32)

    itemsize = jnp.dtype(x.dtype).itemsize
    cost = pl.CostEstimate(
        flops=12 * B * S,                 # ~a dozen integer ops / element
        transcendentals=0,
        bytes_accessed=2 * B * S * itemsize,
    )

    return pl.pallas_call(
        kernel,
        out_shape=jax.ShapeDtypeStruct((B, S), x.dtype),
        grid_spec=pltpu.PrefetchScalarGridSpec(
            num_scalar_prefetch=1,
            grid=grid,
            in_specs=[pl.BlockSpec((block_b, block_s), lambda i, j, seed: (i, j))],
            out_specs=pl.BlockSpec((block_b, block_s), lambda i, j, seed: (i, j)),
        ),
        compiler_params=pltpu.CompilerParams(
            dimension_semantics=("parallel", "parallel")),
        cost_estimate=cost,
    )(seed_arr, x)


if __name__ == "__main__":
    # Module "parameters" (from __init__ signature).
    P = 0.4
    DROPPED_INDEX = 3  # e.g. an <unk> token id

    # Small example: batch=8, seq=128 (lane-aligned token-id matrix).
    B, S = 8, 128
    VOCAB = 1000
    key = jax.random.PRNGKey(0)
    x = jax.random.randint(key, (B, S), minval=4, maxval=VOCAB, dtype=jnp.int32)

    out = word_dropout(x, seed=0, p=P, dropped_index=DROPPED_INDEX, training=True)
    out = jax.block_until_ready(out)

    # Sanity checks on the semantics.
    assert out.shape == x.shape and out.dtype == x.dtype
    # Column 0 is never dropped.
    assert bool(jnp.all(out[:, 0] == x[:, 0]))
    # Every element is either unchanged or replaced by dropped_index.
    changed = out != x
    assert bool(jnp.all(jnp.where(changed, out == DROPPED_INDEX, True)))
    # With p=0.4 over 8*127 eligible positions, some should have been dropped.
    assert int(jnp.sum(changed)) > 0

    # Eval mode / p == 0 is identity.
    out_eval = word_dropout(x, seed=0, p=P, dropped_index=DROPPED_INDEX, training=False)
    assert bool(jnp.all(out_eval == x))

    print("KERNEL_OK")
</pallas_src>

<mosaic_0001>
module attributes {stable_mosaic.version = 11 : i64} {
  func.func @_word_dropout_kernel(%arg0: i32, %arg1: i32, %arg2: memref<1xi32, #tpu.memory_space<smem>>, %arg3: memref<8x128xi32, #tpu.memory_space<vmem>>, %arg4: memref<8x128xi32, #tpu.memory_space<vmem>>) attributes {dimension_semantics = [#tpu.dimension_semantics<parallel>, #tpu.dimension_semantics<parallel>], iteration_bounds = array<i64: 1, 1>, scalar_prefetch = 1 : i64, scratch_operands = 0 : i64, tpu.core_type = #tpu.core_type<tc>, window_params = [{transform_indices = @transform_0, window_bounds = array<i64: 8, 128>}, {transform_indices = @transform_1, window_bounds = array<i64: 8, 128>}]} {
    %c0 = arith.constant 0 : index
    %c0_0 = arith.constant 0 : index
    %0 = vector.load %arg3[%c0, %c0_0] : memref<8x128xi32, #tpu.memory_space<vmem>>, vector<8x128xi32>
    %c8_i32 = arith.constant 8 : i32
    %1 = arith.muli %arg0, %c8_i32 : i32
    %c128_i32 = arith.constant 128 : i32
    %2 = arith.muli %arg1, %c128_i32 : i32
    %3 = tpu.iota {dimensions = array<i32: 0>} : vector<8x128xi32>
    %4 = vector.broadcast %1 : i32 to vector<8x128xi32>
    %5 = arith.addi %3, %4 : vector<8x128xi32>
    %6 = tpu.iota {dimensions = array<i32: 1>} : vector<8x128xi32>
    %7 = vector.broadcast %2 : i32 to vector<8x128xi32>
    %8 = arith.addi %6, %7 : vector<8x128xi32>
    %c128_i32_1 = arith.constant 128 : i32
    %9 = vector.broadcast %c128_i32_1 : i32 to vector<8x128xi32>
    %10 = arith.muli %5, %9 : vector<8x128xi32>
    %11 = arith.addi %10, %8 : vector<8x128xi32>
    %c0_2 = arith.constant 0 : index
    %12 = memref.load %arg2[%c0_2] : memref<1xi32, #tpu.memory_space<smem>>
    %c-1640531527_i32 = arith.constant -1640531527 : i32
    %13 = arith.muli %12, %c-1640531527_i32 : i32
    %14 = vector.broadcast %13 : i32 to vector<8x128xi32>
    %15 = arith.xori %11, %14 : vector<8x128xi32>
    %c16_i32 = arith.constant 16 : i32
    %16 = vector.broadcast %c16_i32 : i32 to vector<8x128xi32>
    %17 = arith.shrui %15, %16 : vector<8x128xi32>
    %18 = arith.xori %15, %17 : vector<8x128xi32>
    %c2146121005_i32 = arith.constant 2146121005 : i32
    %19 = vector.broadcast %c2146121005_i32 : i32 to vector<8x128xi32>
    %20 = arith.muli %18, %19 : vector<8x128xi32>
    %c15_i32 = arith.constant 15 : i32
    %21 = vector.broadcast %c15_i32 : i32 to vector<8x128xi32>
    %22 = arith.shrui %20, %21 : vector<8x128xi32>
    %23 = arith.xori %20, %22 : vector<8x128xi32>
    %c-2073254261_i32 = arith.constant -2073254261 : i32
    %24 = vector.broadcast %c-2073254261_i32 : i32 to vector<8x128xi32>
    %25 = arith.muli %23, %24 : vector<8x128xi32>
    %c16_i32_3 = arith.constant 16 : i32
    %26 = vector.broadcast %c16_i32_3 : i32 to vector<8x128xi32>
    %27 = arith.shrui %25, %26 : vector<8x128xi32>
    %28 = arith.xori %25, %27 : vector<8x128xi32>
    %c1717986918_i32 = arith.constant 1717986918 : i32
    %29 = vector.broadcast %c1717986918_i32 : i32 to vector<8x128xi32>
    %30 = arith.cmpi ult, %28, %29 : vector<8x128xi32>
    %c0_i32 = arith.constant 0 : i32
    %31 = vector.broadcast %c0_i32 : i32 to vector<8x128xi32>
    %32 = arith.cmpi ne, %8, %31 : vector<8x128xi32>
    %33 = arith.andi %30, %32 : vector<8x128xi1>
    %c3_i32 = arith.constant 3 : i32
    %34 = vector.broadcast %c3_i32 : i32 to vector<8x128xi32>
    %35 = arith.select %33, %34, %0 : vector<8x128xi1>, vector<8x128xi32>
    %c0_4 = arith.constant 0 : index
    %c0_5 = arith.constant 0 : index
    %36 = vector.load %arg4[%c0_4, %c0_5] : memref<8x128xi32, #tpu.memory_space<vmem>>, vector<8x128xi32>
    tpu.vector_store %arg4[%c0_4, %c0_5], %35 {strides = array<i32>} : memref<8x128xi32, #tpu.memory_space<vmem>>, vector<8x128xi32>,
    return
  }
  func.func @transform_0(%arg0: i32, %arg1: i32, %arg2: memref<1xi32, #tpu.memory_space<smem>>) -> (i32, i32) {
    %c0_i32 = arith.constant 0 : i32
    return %arg0, %arg1 : i32, i32
  }
  func.func @transform_1(%arg0: i32, %arg1: i32, %arg2: memref<1xi32, #tpu.memory_space<smem>>) -> (i32, i32) {
    %c0_i32 = arith.constant 0 : i32
    return %arg0, %arg1 : i32, i32
  }
}

</mosaic_0001>

<llo_original>
// kernel: tpu_custom_call.1
$region0: #{tpu_custom_call.1}
  #allocation0 [shape = 'u32[]', space=smem, size = 0x4, offset = 0x4, fixed_abs, tag = 'smem constant byte address 0x4 - core index']
  #allocation1 [shape = 'u32[144,128]{1,0:T(1,128)}', space=vmem, size = 0x12000, scoped, tag = 'internal scratch']
  #allocation2 [shape = 's32[1]{0}', space=sflag, size = 0x4, scoped, tag = 'scoped memory for tpu_custom_call.1']
  #allocation3 [shape = 's32[1]{0:T(128)S(6)}', space=smem, size = 0x200, scoped, tag = 'prefetched SMEM operand 0']
  %s0 = inlined_call_operand.<no memory space> [shape: s32[1], index: 0, kind: input, shape index: {}]
  %s1 = inlined_call_operand.hbm [shape: s32[8,128], index: 1, kind: input, shape index: {}]
  %s2 = inlined_call_operand.hbm [shape: s32[8,128], index: 2, kind: output, shape index: {}]
  %s3 = sld [smem:[#allocation0]]
  $region18: #{tpu_custom_call.1} parent=0
    _
  %s5 = ssub.s32 1, %s3
  %s6 = scalar_select 0, %s5, %s3
  %7 = sst [smem:[#allocation3]] %s0
  $region1: #{tpu_custom_call.1} parent=0
    #allocation4 [shape = 'u8[4096]{0}', space=vmem, size = 0x1000, scoped, tag = 'input window, operand 1, single buffered']
    #allocation5 [shape = 's32[1]{0}', space=sflag, size = 0x4, scoped, tag = 'scoped memory for tpu_custom_call.1']
    #allocation6 [shape = 's32[1]{0}', space=sflag, size = 0x4, scoped, tag = 'scoped memory for tpu_custom_call.1']
    #allocation7 [shape = 'u8[4096]{0}', space=vmem, size = 0x1000, scoped, tag = 'output window, operand 0, single buffered']
    %8 = vsyncpa [#allocation5], 0
    %9 = vsyncpa [#allocation6], 0
    // Predicated region
    $region2: #{tpu_custom_call.1} parent=1 // pred_check
      _
    $region3: #{tpu_custom_call.1} parent=1 // pred_check_branch
      %11 = sbr.rel (0) target = $region5
    $region4: #{tpu_custom_call.1} parent=1 // pred_region
      %s13 = ssub.s32 128, 128
      %14 = vsyncadd [#allocation5], %s13
      %s16 = sshll.u32 [#allocation4], 4
      %s17 = int_to_ptr.vmem [resolvable:$true] %s16
      %19 = dma.hbm_to_vmem [thread:$0]  %s1, 128, %s17, [#allocation5]
    $region5: #{tpu_custom_call.1} parent=1 // pred_fallthru
      _
    // Predicated region
    $region6: #{tpu_custom_call.1} parent=1 // pred_check
      _
    $region7: #{tpu_custom_call.1} parent=1 // pred_check_branch
      %21 = sbr.rel (0) target = $region9
    $region8: #{tpu_custom_call.1} parent=1 // pred_region
      %22 = dma.done [#allocation5], 128
    $region9: #{tpu_custom_call.1} parent=1 // pred_fallthru
      _
    %v23 = vld [vmem:[#allocation4] sm:$0xff]
    %s24 = smul.u32 0, 8
    %s25 = smul.u32 0, 128
    %v26 = vlaneseq
    %v27 = vshrl.u32 %v26, 7
    %v28 = vstv %s24
    %v29 = vadd.s32 %v27, %v28
    %v30 = vlaneseq
    %v31 = vand.u32 %v30, 127
    %v32 = vstv %s25
    %v33 = vadd.s32 %v31, %v32
    %v34 = vmul.u32 %v29, 128
    %v35 = vadd.s32 %v34, %v33
    %s36 = sld [smem:[#allocation3]]
    %s37 = smul.u32 %s36, 2654435769
    %v38 = vstv %s37
    %v39 = vxor.u32 %v35, %v38
    %v40 = vshrl.u32 %v39, 16
    %v41 = vxor.u32 %v39, %v40
    %v42 = vmul.u32 %v41, 2146121005
    %v43 = vshrl.u32 %v42, 15
    %v44 = vxor.u32 %v42, %v43
    %v45 = vmul.u32 %v44, 2221713035
    %v46 = vshrl.u32 %v45, 16
    %v47 = vxor.u32 %v45, %v46
    %vm48 = vcmp.lt.u32.totalorder %v47, 1717986918
    %vm49 = vcmp.ne.s32.totalorder %v33, 0
    %vm50 = vmand %vm48, %vm49
    %v51 = vsel %vm50, 3, %v23
    %52 = vst [vmem:[#allocation7] sm:$0xff] %v51
    // Predicated region
    $region10: #{tpu_custom_call.1} parent=1 // pred_check
      _
    $region11: #{tpu_custom_call.1} parent=1 // pred_check_branch
      %54 = sbr.rel (0) target = $region13
    $region12: #{tpu_custom_call.1} parent=1 // pred_region
      %s56 = ssub.s32 128, 128
      %57 = vsyncadd [#allocation6], %s56
      %s59 = sshll.u32 [#allocation7], 4
      %s60 = int_to_ptr.vmem [resolvable:$true] %s59
      %62 = dma.vmem_to_hbm [thread:$0]  %s60, 128, %s2, [#allocation6]
    $region13: #{tpu_custom_call.1} parent=1 // pred_fallthru
      _
    // Predicated region
    $region14: #{tpu_custom_call.1} parent=1 // pred_check
      _
    $region15: #{tpu_custom_call.1} parent=1 // pred_check_branch
      %64 = sbr.rel (0) target = $region17
    $region16: #{tpu_custom_call.1} parent=1 // pred_region
      %65 = dma.done [#allocation6], 128
    $region17: #{tpu_custom_call.1} parent=1 // pred_fallthru
      _
    %66 = vsyncpa [#allocation5], 1
    %67 = vsyncpa [#allocation6], 1

</llo_original>
